<compile_context>
chip_gen: v7x
topology: tpu7x:2x2x1
jax: 0.10.0
libtpu: 0.0.40
codegen_flags: <defaults>
</compile_context>

<pallas_src>
import jax
import jax.numpy as jnp
from jax.experimental import pallas as pl
from jax.experimental.pallas import tpu as pltpu


def _round_up(x, m):
    return ((x + m - 1) // m) * m


# ------------------------------ Pallas kernel --------------------------------
def _mlp_kernel(u_ref, m_ref, w1u_ref, w1m_ref, b1_ref, w2_ref, b2_ref,
                w3_ref, b3_ref, o_ref):
    # u, m:      (TB, E_pad)          activations, batch on sublanes
    # w1u, w1m:  (E_pad, 128)         fc1 weight split + zero-padded, (in, out)
    # b1: (1, 128)   w2: (128, 64)   b2: (1, 64)
    # w3: (1, 64)  (fc3 weight as a row)   b3: (1, 1)
    # o:  (TB, 1)
    # fc1: two MXU pushes into the same f32 accumulator (concat eliminated).
    h1 = jnp.dot(u_ref[...], w1u_ref[...], preferred_element_type=jnp.float32)
    h1 = h1 + jnp.dot(m_ref[...], w1m_ref[...],
                      preferred_element_type=jnp.float32)
    h1 = jnp.maximum(h1 + b1_ref[...], 0.0)                      # relu(fc1)

    # fc2 on the MXU (operands in the weight dtype, f32 accumulation).
    h2 = jnp.dot(h1.astype(w2_ref.dtype), w2_ref[...],
                 preferred_element_type=jnp.float32)
    h2 = jnp.maximum(h2 + b2_ref[...], 0.0)                      # relu(fc2)

    # fc3 (64 -> 1): VPU multiply + XLU lane reduction, keeps the MXU free.
    out = jnp.sum(h2 * w3_ref[...], axis=-1, keepdims=True) + b3_ref[...]
    o_ref[...] = out.astype(o_ref.dtype)


# -------------------------------- wrapper ------------------------------------
def recommender_forward(params, user_ids, movie_ids, *, block_b=1024):
    """Forward matching RecommenderNN.forward(user, movie) -> (B, 1) float32."""
    B = user_ids.shape[0]
    tb = min(block_b, _round_up(B, 8))
    b_pad = _round_up(B, tb)
    if b_pad != B:  # pad the cheap id vectors, not the gathered activations
        user_ids = jnp.pad(user_ids, (0, b_pad - B))
        movie_ids = jnp.pad(movie_ids, (0, b_pad - B))

    # Embedding lookups (data-dependent gather) stay in plain JAX.
    u = jnp.take(params["user_embedding"], user_ids, axis=0)    # (B_pad, E_pad)
    m = jnp.take(params["movie_embedding"], movie_ids, axis=0)  # (B_pad, E_pad)
    e_pad = u.shape[1]
    grid = (b_pad // tb,)

    act_bytes = jnp.dtype(u.dtype).itemsize
    w_bytes = jnp.dtype(params["w2"].dtype).itemsize
    cost = pl.CostEstimate(
        flops=2 * b_pad * (2 * e_pad * 128 + 128 * 64 + 64),
        transcendentals=0,
        bytes_accessed=(2 * b_pad * e_pad * act_bytes           # u, m in
                        + (2 * e_pad * 128 + 128 * 64) * w_bytes  # w1u/w1m/w2
                        + (128 + 64 + 64 + 1) * 4                 # b1/b2/w3/b3
                        + b_pad * 4),                             # out
    )

    act_spec = pl.BlockSpec((tb, e_pad), lambda i: (i, 0))
    out_spec = pl.BlockSpec((tb, 1), lambda i: (i, 0))
    res = lambda shape: pl.BlockSpec(shape, lambda i: (0, 0))   # VMEM-resident

    out = pl.pallas_call(
        _mlp_kernel,
        out_shape=jax.ShapeDtypeStruct((b_pad, 1), jnp.float32),
        grid_spec=pltpu.PrefetchScalarGridSpec(
            num_scalar_prefetch=0,
            grid=grid,
            in_specs=[
                act_spec, act_spec,                       # u, m
                res((e_pad, 128)), res((e_pad, 128)),     # w1_user, w1_movie
                res((1, 128)),                            # b1
                res((128, 64)), res((1, 64)),             # w2, b2
                res((1, 64)), res((1, 1)),                # w3, b3
            ],
            out_specs=out_spec,
        ),
        compiler_params=pltpu.CompilerParams(
            dimension_semantics=("parallel",)),
        cost_estimate=cost,
    )(u, m,
      params["w1_user"], params["w1_movie"], params["b1"],
      params["w2"], params["b2"],
      params["w3"], params["b3"])
    return out[:B]


# --------------------------- parameter creation -------------------------------
def init_params(key, num_users, num_movies, embedding_dim=50,
                param_dtype=jnp.float32):
    e = embedding_dim
    e_pad = _round_up(e, 64)       # lane/sublane-friendly contraction depth
    ks = jax.random.split(key, 8)

    def unif(k, shape, fan_in):
        bound = 1.0 / (fan_in ** 0.5)
        return jax.random.uniform(k, shape, jnp.float32, -bound, bound)

    def pad_cols(x, n):
        return jnp.pad(x, ((0, 0), (0, n - x.shape[1])))

    def pad_rows(x, n):
        return jnp.pad(x, ((0, n - x.shape[0]), (0, 0)))

    # nn.Embedding default init ~ N(0, 1); padded columns are zero.
    user_emb = pad_cols(
        jax.random.normal(ks[0], (num_users, e), jnp.float32), e_pad)
    movie_emb = pad_cols(
        jax.random.normal(ks[1], (num_movies, e), jnp.float32), e_pad)

    # nn.Linear ~ U(-1/sqrt(fan_in), +1/sqrt(fan_in)); weights stored (in, out).
    w1 = unif(ks[2], (2 * e, 128), 2 * e)        # == fc1.weight.T
    w1_user = pad_rows(w1[:e], e_pad)            # (E_pad, 128), zero pad rows
    w1_movie = pad_rows(w1[e:], e_pad)

    return {
        "user_embedding": user_emb.astype(param_dtype),
        "movie_embedding": movie_emb.astype(param_dtype),
        "w1_user": w1_user.astype(param_dtype),
        "w1_movie": w1_movie.astype(param_dtype),
        "b1": unif(ks[3], (1, 128), 2 * e),
        "w2": unif(ks[4], (128, 64), 128).astype(param_dtype),
        "b2": unif(ks[5], (1, 64), 128),
        "w3": unif(ks[6], (1, 64), 64),          # fc3.weight as a (1, 64) row
        "b3": unif(ks[7], (1, 1), 64),
    }


# -------------------------------- reference -----------------------------------
def reference_forward(params, user_ids, movie_ids):
    f32 = lambda a: a.astype(jnp.float32)
    u = jnp.take(f32(params["user_embedding"]), user_ids, axis=0)
    m = jnp.take(f32(params["movie_embedding"]), movie_ids, axis=0)
    h1 = jnp.maximum(u @ f32(params["w1_user"]) + m @ f32(params["w1_movie"])
                     + params["b1"], 0.0)
    h2 = jnp.maximum(h1 @ f32(params["w2"]) + params["b2"], 0.0)
    return h2 @ params["w3"].T + params["b3"]


if __name__ == "__main__":
    num_users, num_movies, embedding_dim = 64, 128, 50
    batch = 8

    key = jax.random.PRNGKey(0)
    pkey, ukey, mkey, u2key, m2key = jax.random.split(key, 5)
    params = init_params(pkey, num_users, num_movies, embedding_dim)

    user_ids = jax.random.randint(ukey, (batch,), 0, num_users, dtype=jnp.int32)
    movie_ids = jax.random.randint(mkey, (batch,), 0, num_movies, dtype=jnp.int32)

    fwd = jax.jit(recommender_forward, static_argnames=("block_b",))

    # --- f32 path (strict check) ---------------------------------------------
    out = jax.block_until_ready(fwd(params, user_ids, movie_ids))
    ref = reference_forward(params, user_ids, movie_ids)
    assert out.shape == (batch, 1), out.shape
    assert jnp.allclose(out, ref, atol=1e-4, rtol=1e-4), (out, ref)

    # --- larger batch exercising the batch-tiled grid + padding --------------
    big_b = 300
    big_users = jax.random.randint(u2key, (big_b,), 0, num_users, dtype=jnp.int32)
    big_movies = jax.random.randint(m2key, (big_b,), 0, num_movies, dtype=jnp.int32)
    out_big = jax.block_until_ready(fwd(params, big_users, big_movies, block_b=128))
    ref_big = reference_forward(params, big_users, big_movies)
    assert out_big.shape == (big_b, 1), out_big.shape
    assert jnp.allclose(out_big, ref_big, atol=1e-4, rtol=1e-4)

    # --- bf16-operand path (v5e/v6e/v7x MXU), f32 accumulation ----------------
    params_bf16 = dict(params)
    for name in ("user_embedding", "movie_embedding", "w1_user", "w1_movie", "w2"):
        params_bf16[name] = params[name].astype(jnp.bfloat16)
    out_bf16 = jax.block_until_ready(fwd(params_bf16, user_ids, movie_ids))
    assert out_bf16.shape == (batch, 1), out_bf16.shape
    assert jnp.allclose(out_bf16, ref, atol=0.15, rtol=0.15), (out_bf16, ref)

    print("KERNEL_OK")
</pallas_src>

<mosaic_0001>
module attributes {stable_mosaic.version = 11 : i64} {
  func.func @_mlp_kernel(%arg0: i32, %arg1: memref<8x64xf32, #tpu.memory_space<vmem>>, %arg2: memref<8x64xf32, #tpu.memory_space<vmem>>, %arg3: memref<64x128xf32, #tpu.memory_space<vmem>>, %arg4: memref<64x128xf32, #tpu.memory_space<vmem>>, %arg5: memref<1x128xf32, #tpu.memory_space<vmem>>, %arg6: memref<128x64xf32, #tpu.memory_space<vmem>>, %arg7: memref<1x64xf32, #tpu.memory_space<vmem>>, %arg8: memref<1x64xf32, #tpu.memory_space<vmem>>, %arg9: memref<1x1xf32, #tpu.memory_space<vmem>>, %arg10: memref<8x1xf32, #tpu.memory_space<vmem>>) attributes {dimension_semantics = [#tpu.dimension_semantics<parallel>], iteration_bounds = array<i64: 1>, scalar_prefetch = 0 : i64, scratch_operands = 0 : i64, tpu.core_type = #tpu.core_type<tc>, window_params = [{transform_indices = @transform_0, window_bounds = array<i64: 8, 64>}, {transform_indices = @transform_1, window_bounds = array<i64: 8, 64>}, {pipeline_mode = #tpu.pipeline_mode<synchronous>, transform_indices = @transform_2, window_bounds = array<i64: 64, 128>}, {pipeline_mode = #tpu.pipeline_mode<synchronous>, transform_indices = @transform_3, window_bounds = array<i64: 64, 128>}, {pipeline_mode = #tpu.pipeline_mode<synchronous>, transform_indices = @transform_4, window_bounds = array<i64: 1, 128>}, {pipeline_mode = #tpu.pipeline_mode<synchronous>, transform_indices = @transform_5, window_bounds = array<i64: 128, 64>}, {pipeline_mode = #tpu.pipeline_mode<synchronous>, transform_indices = @transform_6, window_bounds = array<i64: 1, 64>}, {pipeline_mode = #tpu.pipeline_mode<synchronous>, transform_indices = @transform_7, window_bounds = array<i64: 1, 64>}, {pipeline_mode = #tpu.pipeline_mode<synchronous>, transform_indices = @transform_8, window_bounds = array<i64: 1, 1>}, {transform_indices = @transform_9, window_bounds = array<i64: 8, 1>}]} {
    %c0 = arith.constant 0 : index
    %c0_0 = arith.constant 0 : index
    %0 = vector.load %arg1[%c0, %c0_0] : memref<8x64xf32, #tpu.memory_space<vmem>>, vector<8x64xf32>
    %c0_1 = arith.constant 0 : index
    %c0_2 = arith.constant 0 : index
    %1 = vector.load %arg3[%c0_1, %c0_2] : memref<64x128xf32, #tpu.memory_space<vmem>>, vector<64x128xf32>
    %cst = arith.constant dense<0.000000e+00> : vector<8x128xf32>
    %2 = tpu.matmul %0, %1, %cst {dimension_numbers = #tpu.dot_dimension_numbers<[1], [0], [0], [1], [0, 0, 1, 1], [], []>} : vector<8x64xf32>, vector<64x128xf32>, vector<8x128xf32> -> vector<8x128xf32>
    %c0_3 = arith.constant 0 : index
    %c0_4 = arith.constant 0 : index
    %3 = vector.load %arg2[%c0_3, %c0_4] : memref<8x64xf32, #tpu.memory_space<vmem>>, vector<8x64xf32>
    %c0_5 = arith.constant 0 : index
    %c0_6 = arith.constant 0 : index
    %4 = vector.load %arg4[%c0_5, %c0_6] : memref<64x128xf32, #tpu.memory_space<vmem>>, vector<64x128xf32>
    %cst_7 = arith.constant dense<0.000000e+00> : vector<8x128xf32>
    %5 = tpu.matmul %3, %4, %cst_7 {dimension_numbers = #tpu.dot_dimension_numbers<[1], [0], [0], [1], [0, 0, 1, 1], [], []>} : vector<8x64xf32>, vector<64x128xf32>, vector<8x128xf32> -> vector<8x128xf32>
    %6 = arith.addf %2, %5 : vector<8x128xf32>
    %c0_8 = arith.constant 0 : index
    %c0_9 = arith.constant 0 : index
    %7 = vector.load %arg5[%c0_8, %c0_9] : memref<1x128xf32, #tpu.memory_space<vmem>>, vector<1x128xf32>
    %8 = vector.broadcast %7 : vector<1x128xf32> to vector<8x128xf32>
    %9 = arith.addf %6, %8 : vector<8x128xf32>
    %cst_10 = arith.constant 0.000000e+00 : f32
    %10 = vector.broadcast %cst_10 : f32 to vector<8x128xf32>
    %11 = arith.maximumf %9, %10 : vector<8x128xf32>
    %c0_11 = arith.constant 0 : index
    %c0_12 = arith.constant 0 : index
    %12 = vector.load %arg6[%c0_11, %c0_12] : memref<128x64xf32, #tpu.memory_space<vmem>>, vector<128x64xf32>
    %cst_13 = arith.constant dense<0.000000e+00> : vector<8x64xf32>
    %13 = tpu.matmul %11, %12, %cst_13 {dimension_numbers = #tpu.dot_dimension_numbers<[1], [0], [0], [1], [0, 0, 1, 1], [], []>} : vector<8x128xf32>, vector<128x64xf32>, vector<8x64xf32> -> vector<8x64xf32>
    %c0_14 = arith.constant 0 : index
    %c0_15 = arith.constant 0 : index
    %14 = vector.load %arg7[%c0_14, %c0_15] : memref<1x64xf32, #tpu.memory_space<vmem>>, vector<1x64xf32>
    %15 = vector.broadcast %14 : vector<1x64xf32> to vector<8x64xf32>
    %16 = arith.addf %13, %15 : vector<8x64xf32>
    %cst_16 = arith.constant 0.000000e+00 : f32
    %17 = vector.broadcast %cst_16 : f32 to vector<8x64xf32>
    %18 = arith.maximumf %16, %17 : vector<8x64xf32>
    %c0_17 = arith.constant 0 : index
    %c0_18 = arith.constant 0 : index
    %19 = vector.load %arg8[%c0_17, %c0_18] : memref<1x64xf32, #tpu.memory_space<vmem>>, vector<1x64xf32>
    %20 = vector.broadcast %19 : vector<1x64xf32> to vector<8x64xf32>
    %21 = arith.mulf %18, %20 : vector<8x64xf32>
    %cst_19 = arith.constant dense<0.000000e+00> : vector<8xf32>
    %22 = vector.multi_reduction <add>, %21, %cst_19 [1] : vector<8x64xf32> to vector<8xf32>
    %23 = vector.shape_cast %22 : vector<8xf32> to vector<8x1xf32>
    %c0_20 = arith.constant 0 : index
    %c0_21 = arith.constant 0 : index
    %24 = vector.load %arg9[%c0_20, %c0_21] : memref<1x1xf32, #tpu.memory_space<vmem>>, vector<1x1xf32>
    %25 = vector.broadcast %24 : vector<1x1xf32> to vector<8x1xf32>
    %26 = arith.addf %23, %25 : vector<8x1xf32>
    %c0_22 = arith.constant 0 : index
    %c0_23 = arith.constant 0 : index
    %27 = vector.load %arg10[%c0_22, %c0_23] : memref<8x1xf32, #tpu.memory_space<vmem>>, vector<8x1xf32>
    tpu.vector_store %arg10[%c0_22, %c0_23], %26 {strides = array<i32>} : memref<8x1xf32, #tpu.memory_space<vmem>>, vector<8x1xf32>,
    return
  }
  func.func @transform_0(%arg0: i32) -> (i32, i32) {
    %c0_i32 = arith.constant 0 : i32
    %c0_i32_0 = arith.constant 0 : i32
    return %arg0, %c0_i32 : i32, i32
  }
  func.func @transform_1(%arg0: i32) -> (i32, i32) {
    %c0_i32 = arith.constant 0 : i32
    %c0_i32_0 = arith.constant 0 : i32
    return %arg0, %c0_i32 : i32, i32
  }
  func.func @transform_2(%arg0: i32) -> (i32, i32) {
    %c0_i32 = arith.constant 0 : i32
    %c0_i32_0 = arith.constant 0 : i32
    %c0_i32_1 = arith.constant 0 : i32
    return %c0_i32, %c0_i32_0 : i32, i32
  }
  func.func @transform_3(%arg0: i32) -> (i32, i32) {
    %c0_i32 = arith.constant 0 : i32
    %c0_i32_0 = arith.constant 0 : i32
    %c0_i32_1 = arith.constant 0 : i32
    return %c0_i32, %c0_i32_0 : i32, i32
  }
  func.func @transform_4(%arg0: i32) -> (i32, i32) {
    %c0_i32 = arith.constant 0 : i32
    %c0_i32_0 = arith.constant 0 : i32
    %c0_i32_1 = arith.constant 0 : i32
    return %c0_i32, %c0_i32_0 : i32, i32
  }
  func.func @transform_5(%arg0: i32) -> (i32, i32) {
    %c0_i32 = arith.constant 0 : i32
    %c0_i32_0 = arith.constant 0 : i32
    %c0_i32_1 = arith.constant 0 : i32
    return %c0_i32, %c0_i32_0 : i32, i32
  }
  func.func @transform_6(%arg0: i32) -> (i32, i32) {
    %c0_i32 = arith.constant 0 : i32
    %c0_i32_0 = arith.constant 0 : i32
    %c0_i32_1 = arith.constant 0 : i32
    return %c0_i32, %c0_i32_0 : i32, i32
  }
  func.func @transform_7(%arg0: i32) -> (i32, i32) {
    %c0_i32 = arith.constant 0 : i32
    %c0_i32_0 = arith.constant 0 : i32
    %c0_i32_1 = arith.constant 0 : i32
    return %c0_i32, %c0_i32_0 : i32, i32
  }
  func.func @transform_8(%arg0: i32) -> (i32, i32) {
    %c0_i32 = arith.constant 0 : i32
    %c0_i32_0 = arith.constant 0 : i32
    %c0_i32_1 = arith.constant 0 : i32
    return %c0_i32, %c0_i32_0 : i32, i32
  }
  func.func @transform_9(%arg0: i32) -> (i32, i32) {
    %c0_i32 = arith.constant 0 : i32
    %c0_i32_0 = arith.constant 0 : i32
    return %arg0, %c0_i32 : i32, i32
  }
}

</mosaic_0001>

<llo_original>
// kernel: recommender_forward.1
$region0: #{recommender_forward.1}
  #allocation0 [shape = 'u32[]', space=smem, size = 0x4, offset = 0x4, fixed_abs, tag = 'smem constant byte address 0x4 - core index']
  #allocation1 [shape = 'u32[144,128]{1,0:T(1,128)}', space=vmem, size = 0x12000, scoped, tag = 'internal scratch']
  #allocation2 [shape = 'f32[1,1]{1,0:T(1,128)S(1)}', space=vmem, size = 0x200, scoped, tag = 'scoped memory for recommender_forward.1']
  %s0 = inlined_call_operand.vmem [shape: f32[8,64], index: 0, kind: input, shape index: {}]
  %s1 = inlined_call_operand.vmem [shape: f32[8,64], index: 1, kind: input, shape index: {}]
  %s2 = inlined_call_operand.vmem [shape: f32[64,128], index: 2, kind: input, shape index: {}]
  %s3 = inlined_call_operand.vmem [shape: f32[64,128], index: 3, kind: input, shape index: {}]
  %s4 = inlined_call_operand.vmem [shape: f32[1,128], index: 4, kind: input, shape index: {}]
  %s5 = inlined_call_operand.vmem [shape: f32[128,64], index: 5, kind: input, shape index: {}]
  %s6 = inlined_call_operand.vmem [shape: f32[1,64], index: 6, kind: input, shape index: {}]
  %s7 = inlined_call_operand.vmem [shape: f32[1,64], index: 7, kind: input, shape index: {}]
  %s8 = inlined_call_operand.<no memory space> [shape: f32[1,1], index: 8, kind: input, shape index: {}]
  %s9 = inlined_call_operand.vmem [shape: f32[8,1], index: 9, kind: output, shape index: {}]
  %s10 = sld [smem:[#allocation0]]
  $region46: #{recommender_forward.1} parent=0
    _
  %s12 = ssub.s32 1, %s10
  %s13 = scalar_select 0, %s12, %s10
  %v14 = vstv %s8
  %15 = vst [vmem:[#allocation2] sm:$0x1] %v14
  // Predicated region
  $region2: #{recommender_forward.1} parent=0 // pred_check
    _
  $region3: #{recommender_forward.1} parent=0 // pred_check_branch
    %17 = sbr.rel (0) target = $region5
  $region4: #{recommender_forward.1} parent=0 // pred_region
    _
  $region5: #{recommender_forward.1} parent=0 // pred_fallthru
    _
  // Predicated region
  $region6: #{recommender_forward.1} parent=0 // pred_check
    _
  $region7: #{recommender_forward.1} parent=0 // pred_check_branch
    %19 = sbr.rel (0) target = $region9
  $region8: #{recommender_forward.1} parent=0 // pred_region
    _
  $region9: #{recommender_forward.1} parent=0 // pred_fallthru
    _
  // Predicated region
  $region10: #{recommender_forward.1} parent=0 // pred_check
    _
  $region11: #{recommender_forward.1} parent=0 // pred_check_branch
    %21 = sbr.rel (0) target = $region13
  $region12: #{recommender_forward.1} parent=0 // pred_region
    _
  $region13: #{recommender_forward.1} parent=0 // pred_fallthru
    _
  // Predicated region
  $region14: #{recommender_forward.1} parent=0 // pred_check
    _
  $region15: #{recommender_forward.1} parent=0 // pred_check_branch
    %23 = sbr.rel (0) target = $region17
  $region16: #{recommender_forward.1} parent=0 // pred_region
    _
  $region17: #{recommender_forward.1} parent=0 // pred_fallthru
    _
  // Predicated region
  $region18: #{recommender_forward.1} parent=0 // pred_check
    _
  $region19: #{recommender_forward.1} parent=0 // pred_check_branch
    %25 = sbr.rel (0) target = $region21
  $region20: #{recommender_forward.1} parent=0 // pred_region
    _
  $region21: #{recommender_forward.1} parent=0 // pred_fallthru
    _
  // Predicated region
  $region22: #{recommender_forward.1} parent=0 // pred_check
    _
  $region23: #{recommender_forward.1} parent=0 // pred_check_branch
    %27 = sbr.rel (0) target = $region25
  $region24: #{recommender_forward.1} parent=0 // pred_region
    _
  $region25: #{recommender_forward.1} parent=0 // pred_fallthru
    _
  // Predicated region
  $region26: #{recommender_forward.1} parent=0 // pred_check
    _
  $region27: #{recommender_forward.1} parent=0 // pred_check_branch
    %29 = sbr.rel (0) target = $region29
  $region28: #{recommender_forward.1} parent=0 // pred_region
    _
  $region29: #{recommender_forward.1} parent=0 // pred_fallthru
    _
  // Predicated region
  $region30: #{recommender_forward.1} parent=0 // pred_check
    _
  $region31: #{recommender_forward.1} parent=0 // pred_check_branch
    %31 = sbr.rel (0) target = $region33
  $region32: #{recommender_forward.1} parent=0 // pred_region
    _
  $region33: #{recommender_forward.1} parent=0 // pred_fallthru
    _
  // Predicated region
  $region34: #{recommender_forward.1} parent=0 // pred_check
    _
  $region35: #{recommender_forward.1} parent=0 // pred_check_branch
    %33 = sbr.rel (0) target = $region37
  $region36: #{recommender_forward.1} parent=0 // pred_region
    _
  $region37: #{recommender_forward.1} parent=0 // pred_fallthru
    _
  %v34 = vld [vmem:[%s0] sm:$0xff]
  %v35 = vld [vmem:[%s2] sm:$0xff]
  %v36 = vld [vmem:[%s2 + $0x8] sm:$0xff]
  %v37 = vld [vmem:[%s2 + $0x10] sm:$0xff]
  %v38 = vld [vmem:[%s2 + $0x18] sm:$0xff]
  %v39 = vld [vmem:[%s2 + $0x20] sm:$0xff]
  %v40 = vld [vmem:[%s2 + $0x28] sm:$0xff]
  %v41 = vld [vmem:[%s2 + $0x30] sm:$0xff]
  %v42 = vld [vmem:[%s2 + $0x38] sm:$0xff]
  %v43 = vld [vmem:[%s1] sm:$0xff]
  %v44 = vld [vmem:[%s3] sm:$0xff]
  %v45 = vld [vmem:[%s3 + $0x8] sm:$0xff]
  %v46 = vld [vmem:[%s3 + $0x10] sm:$0xff]
  %v47 = vld [vmem:[%s3 + $0x18] sm:$0xff]
  %v48 = vld [vmem:[%s3 + $0x20] sm:$0xff]
  %v49 = vld [vmem:[%s3 + $0x28] sm:$0xff]
  %v50 = vld [vmem:[%s3 + $0x30] sm:$0xff]
  %v51 = vld [vmem:[%s3 + $0x38] sm:$0xff]
  %vm52 = vcmask 523264
  %v54 = vsel %vm52, %v43, 0
  %56 = vmatprep.subr.mxu0 0.0
  %57 = vmatpush1.msra.mxu0 %v44
  %58 = vmatprep.subr.mxu0 0.0
  %59 = vmatpush1.msra.mxu0 %v45
  %60 = vmatprep.subr.mxu0 0.0
  %61 = vmatpush1.msra.mxu0 %v46
  %62 = vmatprep.subr.mxu0 0.0
  %63 = vmatpush1.msra.mxu0 %v47
  %64 = vmatprep.subr.mxu0 0.0
  %65 = vmatpush1.msra.mxu0 %v48
  %66 = vmatprep.subr.mxu0 0.0
  %67 = vmatpush1.msra.mxu0 %v49
  %68 = vmatprep.subr.mxu0 0.0
  %69 = vmatpush1.msra.mxu0 %v50
  %70 = vmatprep.subr.mxu0 0.0
  %71 = vmatpush1.msra.mxu0 %v51
  %72 = vmatprep.subr.mxu0 0.0
  %73 = vmatpush1.msra.mxu0 0.0
  %74 = vmatprep.subr.mxu0 0.0
  %75 = vmatpush1.msra.mxu0 0.0
  %76 = vmatprep.subr.mxu0 0.0
  %77 = vmatpush1.msra.mxu0 0.0
  %78 = vmatprep.subr.mxu0 0.0
  %79 = vmatpush1.msra.mxu0 0.0
  %80 = vmatprep.subr.mxu0 0.0
  %81 = vmatpush1.msra.mxu0 0.0
  %82 = vmatprep.subr.mxu0 0.0
  %83 = vmatpush1.msra.mxu0 0.0
  %84 = vmatprep.subr.mxu0 0.0
  %85 = vmatpush1.msra.mxu0 0.0
  %86 = vmatprep.subr.mxu0 0.0
  %87 = vmatpush1.msra.mxu0 0.0
  %88 = vmatprep.subr.mxu0 0.0
  %89 = vmatpush1.msra.mxu0 0.0
  %90 = vmatprep.subr.mxu0 0.0
  %91 = vmatpush1.msra.mxu0 0.0
  %92 = vmatprep.subr.mxu0 0.0
  %93 = vmatpush1.msra.mxu0 0.0
  %94 = vmatprep.subr.mxu0 0.0
  %95 = vmatpush1.msra.mxu0 0.0
  %96 = vmatprep.subr.mxu0 0.0
  %97 = vmatpush1.msra.mxu0 0.0
  %98 = vmatprep.subr.mxu0 0.0
  %99 = vmatpush1.msra.mxu0 0.0
  %100 = vmatprep.subr.mxu0 0.0
  %101 = vmatpush1.msra.mxu0 0.0
  %102 = vmatprep.subr.mxu0 0.0
  %103 = vmatpush1.msra.mxu0 0.0
  %104 = vmatprep.subr.mxu0 0.0
  %105 = vmatpush1.msra.mxu0 0.0
  %106 = vmatprep.subr.mxu0 0.0
  %107 = vmatpush1.msra.mxu0 0.0
  %108 = vmatprep.subr.mxu0 0.0
  %109 = vmatpush1.msra.mxu0 0.0
  %110 = vmatprep.subr.mxu0 0.0
  %111 = vmatpush1.msra.mxu0 0.0
  %112 = vmatprep.subr.mxu0 0.0
  %113 = vmatpush1.msra.mxu0 0.0
  %114 = vmatprep.subr.mxu0 0.0
  %115 = vmatpush1.msra.mxu0 0.0
  %116 = vmatprep.subr.mxu0 0.0
  %117 = vmatpush1.msra.mxu0 0.0
  %118 = vmatprep.subr.mxu0 0.0
  %119 = vmatpush1.msra.mxu0 0.0
  %120 = vmatprep.mubr.f32.mxu0 0.0
  %121 = vmatmul.mubr.f32.gmra.mrb[0].mxu0 %v54
  %v122 = vpop.f32.mrb[0].mxu0
  %v123 = vadd.f32 0.0, %v122
  %v124 = vpop.f32.mrb[0].mxu0
  %125 = vdwg.mxu0
  %v127 = vsel %vm52, %v34, 0
  %129 = vmatprep.subr.mxu0 0.0
  %130 = vmatpush1.msra.mxu0 %v35
  %131 = vmatprep.subr.mxu0 0.0
  %132 = vmatpush1.msra.mxu0 %v36
  %133 = vmatprep.subr.mxu0 0.0
  %134 = vmatpush1.msra.mxu0 %v37
  %135 = vmatprep.subr.mxu0 0.0
  %136 = vmatpush1.msra.mxu0 %v38
  %137 = vmatprep.subr.mxu0 0.0
  %138 = vmatpush1.msra.mxu0 %v39
  %139 = vmatprep.subr.mxu0 0.0
  %140 = vmatpush1.msra.mxu0 %v40
  %141 = vmatprep.subr.mxu0 0.0
  %142 = vmatpush1.msra.mxu0 %v41
  %143 = vmatprep.subr.mxu0 0.0
  %144 = vmatpush1.msra.mxu0 %v42
  %145 = vmatprep.subr.mxu0 0.0
  %146 = vmatpush1.msra.mxu0 0.0
  %147 = vmatprep.subr.mxu0 0.0
  %148 = vmatpush1.msra.mxu0 0.0
  %149 = vmatprep.subr.mxu0 0.0
  %150 = vmatpush1.msra.mxu0 0.0
  %151 = vmatprep.subr.mxu0 0.0
  %152 = vmatpush1.msra.mxu0 0.0
  %153 = vmatprep.subr.mxu0 0.0
  %154 = vmatpush1.msra.mxu0 0.0
  %155 = vmatprep.subr.mxu0 0.0
  %156 = vmatpush1.msra.mxu0 0.0
  %157 = vmatprep.subr.mxu0 0.0
  %158 = vmatpush1.msra.mxu0 0.0
  %159 = vmatprep.subr.mxu0 0.0
  %160 = vmatpush1.msra.mxu0 0.0
  %161 = vmatprep.subr.mxu0 0.0
  %162 = vmatpush1.msra.mxu0 0.0
  %163 = vmatprep.subr.mxu0 0.0
  %164 = vmatpush1.msra.mxu0 0.0
  %165 = vmatprep.subr.mxu0 0.0
  %166 = vmatpush1.msra.mxu0 0.0
  %167 = vmatprep.subr.mxu0 0.0
  %168 = vmatpush1.msra.mxu0 0.0
  %169 = vmatprep.subr.mxu0 0.0
  %170 = vmatpush1.msra.mxu0 0.0
  %171 = vmatprep.subr.mxu0 0.0
  %172 = vmatpush1.msra.mxu0 0.0
  %173 = vmatprep.subr.mxu0 0.0
  %174 = vmatpush1.msra.mxu0 0.0
  %175 = vmatprep.subr.mxu0 0.0
  %176 = vmatpush1.msra.mxu0 0.0
  %177 = vmatprep.subr.mxu0 0.0
  %178 = vmatpush1.msra.mxu0 0.0
  %179 = vmatprep.subr.mxu0 0.0
  %180 = vmatpush1.msra.mxu0 0.0
  %181 = vmatprep.subr.mxu0 0.0
  %182 = vmatpush1.msra.mxu0 0.0
  %183 = vmatprep.subr.mxu0 0.0
  %184 = vmatpush1.msra.mxu0 0.0
  %185 = vmatprep.subr.mxu0 0.0
  %186 = vmatpush1.msra.mxu0 0.0
  %187 = vmatprep.subr.mxu0 0.0
  %188 = vmatpush1.msra.mxu0 0.0
  %189 = vmatprep.subr.mxu0 0.0
  %190 = vmatpush1.msra.mxu0 0.0
  %191 = vmatprep.subr.mxu0 0.0
  %192 = vmatpush1.msra.mxu0 0.0
  %193 = vmatprep.mubr.f32.mxu0 0.0
  %194 = vmatmul.mubr.f32.gmra.mrb[0].mxu0 %v127
  %v195 = vpop.f32.mrb[0].mxu0
  %v196 = vadd.f32 %v123, %v195
  %v197 = vpop.f32.mrb[0].mxu0
  %198 = vdwg.mxu0
  %v199 = vld [vmem:[%s4] sm:$0x1]
  %v201 = vlaneseq
  %v202 = vshrl.u32 %v201, 7
  %v203 = vsub.s32 0, %v202
  %v204 = vrot.slane %v199, %v203
  %v206 = vadd.f32 %v196, %v204
  %v207 = vmax.f32 %v206, 0.0
  %v208 = vld [vmem:[%s5] sm:$0xff]
  %v209 = vld [vmem:[%s5 + $0x8] sm:$0xff]
  %v210 = vld [vmem:[%s5 + $0x10] sm:$0xff]
  %v211 = vld [vmem:[%s5 + $0x18] sm:$0xff]
  %v212 = vld [vmem:[%s5 + $0x20] sm:$0xff]
  %v213 = vld [vmem:[%s5 + $0x28] sm:$0xff]
  %v214 = vld [vmem:[%s5 + $0x30] sm:$0xff]
  %v215 = vld [vmem:[%s5 + $0x38] sm:$0xff]
  %v216 = vld [vmem:[%s5 + $0x40] sm:$0xff]
  %v217 = vld [vmem:[%s5 + $0x48] sm:$0xff]
  %v218 = vld [vmem:[%s5 + $0x50] sm:$0xff]
  %v219 = vld [vmem:[%s5 + $0x58] sm:$0xff]
  %v220 = vld [vmem:[%s5 + $0x60] sm:$0xff]
  %v221 = vld [vmem:[%s5 + $0x68] sm:$0xff]
  %v222 = vld [vmem:[%s5 + $0x70] sm:$0xff]
  %v223 = vld [vmem:[%s5 + $0x78] sm:$0xff]
  %v224 = vld [vmem:[%s6] sm:$0x1]
  %v226 = vlaneseq
  %v227 = vshrl.u32 %v226, 7
  %v228 = vsub.s32 0, %v227
  %v229 = vrot.slane %v224, %v228
  %231 = vmatprep.subr.mxu0 0.0
  %232 = vmatpush1.msra.mxu0 %v208
  %233 = vmatprep.subr.mxu0 0.0
  %234 = vmatpush1.msra.mxu0 %v209
  %235 = vmatprep.subr.mxu0 0.0
  %236 = vmatpush1.msra.mxu0 %v210
  %237 = vmatprep.subr.mxu0 0.0
  %238 = vmatpush1.msra.mxu0 %v211
  %239 = vmatprep.subr.mxu0 0.0
  %240 = vmatpush1.msra.mxu0 %v212
  %241 = vmatprep.subr.mxu0 0.0
  %242 = vmatpush1.msra.mxu0 %v213
  %243 = vmatprep.subr.mxu0 0.0
  %244 = vmatpush1.msra.mxu0 %v214
  %245 = vmatprep.subr.mxu0 0.0
  %246 = vmatpush1.msra.mxu0 %v215
  %247 = vmatprep.subr.mxu0 0.0
  %248 = vmatpush1.msra.mxu0 %v216
  %249 = vmatprep.subr.mxu0 0.0
  %250 = vmatpush1.msra.mxu0 %v217
  %251 = vmatprep.subr.mxu0 0.0
  %252 = vmatpush1.msra.mxu0 %v218
  %253 = vmatprep.subr.mxu0 0.0
  %254 = vmatpush1.msra.mxu0 %v219
  %255 = vmatprep.subr.mxu0 0.0
  %256 = vmatpush1.msra.mxu0 %v220
  %257 = vmatprep.subr.mxu0 0.0
  %258 = vmatpush1.msra.mxu0 %v221
  %259 = vmatprep.subr.mxu0 0.0
  %260 = vmatpush1.msra.mxu0 %v222
  %261 = vmatprep.subr.mxu0 0.0
  %262 = vmatpush1.msra.mxu0 %v223
  %263 = vmatprep.subr.mxu0 0.0
  %264 = vmatpush1.msra.mxu0 0.0
  %265 = vmatprep.subr.mxu0 0.0
  %266 = vmatpush1.msra.mxu0 0.0
  %267 = vmatprep.subr.mxu0 0.0
  %268 = vmatpush1.msra.mxu0 0.0
  %269 = vmatprep.subr.mxu0 0.0
  %270 = vmatpush1.msra.mxu0 0.0
  %271 = vmatprep.subr.mxu0 0.0
  %272 = vmatpush1.msra.mxu0 0.0
  %273 = vmatprep.subr.mxu0 0.0
  %274 = vmatpush1.msra.mxu0 0.0
  %275 = vmatprep.subr.mxu0 0.0
  %276 = vmatpush1.msra.mxu0 0.0
  %277 = vmatprep.subr.mxu0 0.0
  %278 = vmatpush1.msra.mxu0 0.0
  %279 = vmatprep.subr.mxu0 0.0
  %280 = vmatpush1.msra.mxu0 0.0
  %281 = vmatprep.subr.mxu0 0.0
  %282 = vmatpush1.msra.mxu0 0.0
  %283 = vmatprep.subr.mxu0 0.0
  %284 = vmatpush1.msra.mxu0 0.0
  %285 = vmatprep.subr.mxu0 0.0
  %286 = vmatpush1.msra.mxu0 0.0
  %287 = vmatprep.subr.mxu0 0.0
  %288 = vmatpush1.msra.mxu0 0.0
  %289 = vmatprep.subr.mxu0 0.0
  %290 = vmatpush1.msra.mxu0 0.0
  %291 = vmatprep.subr.mxu0 0.0
  %292 = vmatpush1.msra.mxu0 0.0
  %293 = vmatprep.subr.mxu0 0.0
  %294 = vmatpush1.msra.mxu0 0.0
  %295 = vmatprep.mubr.f32.mxu0 0.0
  %296 = vmatmul.mubr.f32.gmra.mrb[0].mxu0 %v207
  %v297 = vpop.f32.mrb[0].mxu0
  %v298 = vadd.f32 %v229, %v297
  %v299 = vpop.f32.mrb[0].mxu0
  %300 = vdwg.mxu0
  %v301 = vmax.f32 %v298, 0.0
  %v302 = vld [vmem:[%s7] sm:$0x1]
  %v304 = vlaneseq
  %v305 = vshrl.u32 %v304, 7
  %v306 = vsub.s32 0, %v305
  %v307 = vrot.slane %v302, %v306
  %v309 = vmul.f32 %v301, %v307
  %v310 = vsel %vm52, %v309, 0.0
  %311 = vadd.xlane.f32.xlu0 %v310
  %v312 = vpop.xlane.xlu0 %311
  %v313 = vld [vmem:[#allocation2] sm:$0x1]
  %v315 = vlaneseq
  %v316 = vshrl.u32 %v315, 7
  %v317 = vsub.s32 0, %v316
  %v318 = vrot.slane %v313, %v317
  %v320 = vadd.f32 %v312, %v318
  %vm321 = vcmask 7168
  %322 = vst.msk [vmem:[%s9] sm:$0xff] %vm321, %v320
  // Predicated region
  $region38: #{recommender_forward.1} parent=0 // pred_check
    _
  $region39: #{recommender_forward.1} parent=0 // pred_check_branch
    %324 = sbr.rel (0) target = $region41
  $region40: #{recommender_forward.1} parent=0 // pred_region
    _
  $region41: #{recommender_forward.1} parent=0 // pred_fallthru
    _
  // Predicated region
  $region42: #{recommender_forward.1} parent=0 // pred_check
    _
  $region43: #{recommender_forward.1} parent=0 // pred_check_branch
    %326 = sbr.rel (0) target = $region45
  $region44: #{recommender_forward.1} parent=0 // pred_region
    _
  $region45: #{recommender_forward.1} parent=0 // pred_fallthru
    _

</llo_original>
